<compile_context>
chip_gen: v6e
topology: v6e:2x2x1
jax: 0.10.0
libtpu: 0.0.40
codegen_flags: <defaults>
</compile_context>

<pallas_src>
import functools

import jax
import jax.numpy as jnp
import numpy as np
from jax.experimental import pallas as pl
from jax.experimental.pallas import tpu as pltpu


def _freq_loss_kernel(g_ref, t_ref, f_re_ref, f_im_ref, out_ref, *,
                      gen_rows, inv_count):
    """mean(| |RFFT2(g)|_hi - |RFFT2(t)|_hi |) over the high-frequency slab.

    g_ref, t_ref : (N*C, H*W)     f32 VMEM - inputs, one flattened image/row
    f_re, f_im   : (H*W, Kh*Kw)   f32 VMEM - fused 2-D DFT factors restricted
                                             to the high-frequency slab,
                                             'ortho' 1/sqrt(H*W) folded in
    out_ref      : (1, 1)         f32 SMEM - scalar loss
    """
    # Stack generated and target along rows so each factor matmul runs once.
    x = jnp.concatenate([g_ref[...], t_ref[...]], axis=0)       # (2*N*C, H*W)

    # Fused real -> complex 2-D DFT of the slab: exactly two MXU matmuls.
    z_re = jnp.dot(x, f_re_ref[...], preferred_element_type=jnp.float32)
    z_im = jnp.dot(x, f_im_ref[...], preferred_element_type=jnp.float32)

    # |FFT| for both inputs at once (sqrt goes to the EUP slot).
    mag = jnp.sqrt(z_re * z_re + z_im * z_im)                   # (2*N*C, Kh*Kw)

    # L1 between the generated (top rows) and target (bottom rows) magnitudes,
    # fused into a single reduction + one scale == F.l1_loss(reduction='mean').
    diff = mag[:gen_rows, :] - mag[gen_rows:, :]
    out_ref[0, 0] = jnp.sum(jnp.abs(diff)) * inv_count


def _dft_factors(h, w):
    """Trace-time fused 2-D DFT factor matrices for the high-frequency slab."""
    wr = w // 2 + 1
    kh = min(10, h)                      # torch slice [-10:] on the H-freq axis
    kw = min(10, wr)                     # torch slice [-10:] on the rFFT axis
    row_freqs = np.arange(h)[-kh:]       # kept H-axis frequency bins
    col_freqs = np.arange(wr)[-kw:]      # kept W-axis (rFFT) frequency bins

    # Flattened spatial index -> (h, w) coordinates (row-major, matches reshape)
    hh = np.arange(h * w) // w
    ww = np.arange(h * w) % w
    # Flattened output slab index -> (m, k) frequency pair (row-major Kh x Kw)
    m = np.repeat(row_freqs, kw)
    k = np.tile(col_freqs, kh)

    # X[m, k] = (1/sqrt(HW)) * sum_{h,w} x[h, w] * exp(-2*pi*i*(m*h/H + k*w/W))
    phase = 2.0 * np.pi * (np.outer(hh, m) / h + np.outer(ww, k) / w)
    scale = 1.0 / np.sqrt(h * w)         # norm='ortho'
    f_re = (np.cos(phase) * scale).astype(np.float32)
    f_im = (-np.sin(phase) * scale).astype(np.float32)
    return f_re, f_im, kh, kw


def frequency_loss(generated, target):
    """Pallas implementation of FrequencyLoss.forward for NCHW inputs."""
    generated = generated.astype(jnp.float32)
    target = target.astype(jnp.float32)
    n, c, h, w = generated.shape
    f_re, f_im, kh, kw = _dft_factors(h, w)

    # Free (contiguous, no-copy) reshapes only - no wrapper-side HBM glue ops.
    g2 = generated.reshape(n * c, h * w)
    t2 = target.reshape(n * c, h * w)

    kernel = functools.partial(
        _freq_loss_kernel,
        gen_rows=n * c,
        inv_count=1.0 / float(n * c * kh * kw))

    out = pl.pallas_call(
        kernel,
        out_shape=jax.ShapeDtypeStruct((1, 1), jnp.float32),
        in_specs=[pl.BlockSpec(memory_space=pltpu.MemorySpace.VMEM)] * 4,
        out_specs=pl.BlockSpec(memory_space=pltpu.MemorySpace.SMEM),
    )(g2, t2, jnp.asarray(f_re), jnp.asarray(f_im))
    return out[0, 0]


def _frequency_loss_reference(generated, target):
    """Pure-JAX reference (uses jnp.fft) for a sanity check."""
    g = jnp.fft.rfft2(generated.astype(jnp.float32), norm='ortho')
    t = jnp.fft.rfft2(target.astype(jnp.float32), norm='ortho')
    gh = jnp.abs(g[:, :, -10:, -10:])
    th = jnp.abs(t[:, :, -10:, -10:])
    return jnp.mean(jnp.abs(gh - th))


if __name__ == "__main__":
    key = jax.random.PRNGKey(0)
    k1, k2 = jax.random.split(key)
    # NCHW toy shapes: batch=2, channels=4, 16x16 spatial.
    generated = jax.random.normal(k1, (2, 4, 16, 16), dtype=jnp.float32)
    target = jax.random.normal(k2, (2, 4, 16, 16), dtype=jnp.float32)

    loss = jax.jit(frequency_loss)(generated, target)
    loss = jax.block_until_ready(loss)

    ref = _frequency_loss_reference(generated, target)
    # Tolerance covers MXU f32 pass decomposition vs. the XLA FFT reference.
    assert jnp.allclose(loss, ref, rtol=2e-3, atol=5e-4), (loss, ref)

    print("KERNEL_OK")
</pallas_src>

<mosaic_0001>
module attributes {stable_mosaic.version = 11 : i64} {
  func.func @_freq_loss_kernel(%arg0: memref<8x256xf32, #tpu.memory_space<vmem>>, %arg1: memref<8x256xf32, #tpu.memory_space<vmem>>, %arg2: memref<256x90xf32, #tpu.memory_space<vmem>>, %arg3: memref<256x90xf32, #tpu.memory_space<vmem>>, %arg4: memref<1x1xf32, #tpu.memory_space<smem>>) attributes {dimension_semantics = [], scalar_prefetch = 0 : i64, scratch_operands = 0 : i64, tpu.core_type = #tpu.core_type<tc>} {
    %c0 = arith.constant 0 : index
    %c0_0 = arith.constant 0 : index
    %0 = vector.load %arg0[%c0, %c0_0] : memref<8x256xf32, #tpu.memory_space<vmem>>, vector<8x256xf32>
    %c0_1 = arith.constant 0 : index
    %c0_2 = arith.constant 0 : index
    %1 = vector.load %arg1[%c0_1, %c0_2] : memref<8x256xf32, #tpu.memory_space<vmem>>, vector<8x256xf32>
    %2 = tpu.concatenate %0, %1 in 0 : vector<8x256xf32>, vector<8x256xf32> -> vector<16x256xf32>
    %c0_3 = arith.constant 0 : index
    %c0_4 = arith.constant 0 : index
    %3 = vector.load %arg2[%c0_3, %c0_4] : memref<256x90xf32, #tpu.memory_space<vmem>>, vector<256x90xf32>
    %cst = arith.constant dense<0.000000e+00> : vector<16x90xf32>
    %4 = tpu.matmul %2, %3, %cst {dimension_numbers = #tpu.dot_dimension_numbers<[1], [0], [0], [1], [0, 0, 1, 1], [], []>} : vector<16x256xf32>, vector<256x90xf32>, vector<16x90xf32> -> vector<16x90xf32>
    %c0_5 = arith.constant 0 : index
    %c0_6 = arith.constant 0 : index
    %5 = vector.load %arg3[%c0_5, %c0_6] : memref<256x90xf32, #tpu.memory_space<vmem>>, vector<256x90xf32>
    %cst_7 = arith.constant dense<0.000000e+00> : vector<16x90xf32>
    %6 = tpu.matmul %2, %5, %cst_7 {dimension_numbers = #tpu.dot_dimension_numbers<[1], [0], [0], [1], [0, 0, 1, 1], [], []>} : vector<16x256xf32>, vector<256x90xf32>, vector<16x90xf32> -> vector<16x90xf32>
    %7 = arith.mulf %4, %4 : vector<16x90xf32>
    %8 = arith.mulf %6, %6 : vector<16x90xf32>
    %9 = arith.addf %7, %8 : vector<16x90xf32>
    %10 = math.sqrt %9 : vector<16x90xf32>
    %11 = vector.extract_strided_slice %10 {offsets = [0, 0], sizes = [8, 90], strides = [1, 1]} : vector<16x90xf32> to vector<8x90xf32>
    %12 = vector.extract_strided_slice %10 {offsets = [8, 0], sizes = [8, 90], strides = [1, 1]} : vector<16x90xf32> to vector<8x90xf32>
    %13 = arith.subf %11, %12 : vector<8x90xf32>
    %14 = math.absf %13 : vector<8x90xf32>
    %15 = vector.shape_cast %14 : vector<8x90xf32> to vector<1x8x90xf32>
    %cst_8 = arith.constant dense<0.000000e+00> : vector<1xf32>
    %16 = vector.multi_reduction <add>, %15, %cst_8 [1, 2] : vector<1x8x90xf32> to vector<1xf32>
    %17 = vector.shape_cast %16 : vector<1xf32> to vector<1x1x1xf32>
    %18 = vector.extract %17[0, 0, 0] : f32 from vector<1x1x1xf32>
    %cst_9 = arith.constant 0.00138888892 : f32
    %19 = arith.mulf %18, %cst_9 : f32
    %c0_10 = arith.constant 0 : index
    %c0_11 = arith.constant 0 : index
    %20 = memref.load %arg4[%c0_10, %c0_11] : memref<1x1xf32, #tpu.memory_space<smem>>
    memref.store %19, %arg4[%c0_10, %c0_11] : memref<1x1xf32, #tpu.memory_space<smem>>
    return
  }
}

</mosaic_0001>

<llo_original>
// kernel: frequency_loss.1
$region0: #{frequency_loss.1}
  #allocation0 [shape = 'u32[]', space=smem, size = 0x4, offset = 0x4, fixed_abs, tag = 'smem constant byte address 0x4 - core index']
  #allocation1 [shape = 'u32[144,128]{1,0:T(1,128)}', space=vmem, size = 0x12000, scoped, tag = 'internal scratch']
  %s0 = inlined_call_operand.vmem [shape: f32[8,256], index: 0, kind: input, shape index: {}]
  %s1 = inlined_call_operand.vmem [shape: f32[8,256], index: 1, kind: input, shape index: {}]
  %s2 = inlined_call_operand.hbm [shape: f32[256,90], index: 2, kind: input, shape index: {}]
  %s3 = inlined_call_operand.vmem [shape: f32[256,90], index: 3, kind: input, shape index: {}]
  %s4 = inlined_call_operand.hbm [shape: f32[1,1], index: 4, kind: output, shape index: {}]
  %s5 = sld [smem:[#allocation0]]
  $region30: #{frequency_loss.1} parent=0
    _
  %s7 = ssub.s32 1, %s5
  %s8 = scalar_select 0, %s7, %s5
  $region1: #{frequency_loss.1} parent=0
    #allocation2 [shape = 'u8[131072]{0}', space=vmem, size = 0x20000, scoped, tag = 'input window, operand 2, single buffered']
    #allocation3 [shape = 's32[1]{0}', space=sflag, size = 0x4, scoped, tag = 'scoped memory for frequency_loss.1']
    #allocation4 [shape = 's32[1]{0}', space=sflag, size = 0x4, scoped, tag = 'scoped memory for frequency_loss.1']
    #allocation5 [shape = 'u8[512]{0}', space=smem, size = 0x200, scoped, tag = 'output window, operand 0, single buffered']
    %9 = vsyncpa [#allocation3], 0
    %10 = vsyncpa [#allocation4], 0
    // Predicated region
    $region2: #{frequency_loss.1} parent=1 // pred_check
      _
    $region3: #{frequency_loss.1} parent=1 // pred_check_branch
      %12 = sbr.rel (0) target = $region5
    $region4: #{frequency_loss.1} parent=1 // pred_region
      _
    $region5: #{frequency_loss.1} parent=1 // pred_fallthru
      _
    // Predicated region
    $region6: #{frequency_loss.1} parent=1 // pred_check
      _
    $region7: #{frequency_loss.1} parent=1 // pred_check_branch
      %14 = sbr.rel (0) target = $region9
    $region8: #{frequency_loss.1} parent=1 // pred_region
      _
    $region9: #{frequency_loss.1} parent=1 // pred_fallthru
      _
    // Predicated region
    $region10: #{frequency_loss.1} parent=1 // pred_check
      _
    $region11: #{frequency_loss.1} parent=1 // pred_check_branch
      %16 = sbr.rel (0) target = $region13
    $region12: #{frequency_loss.1} parent=1 // pred_region
      %s18 = ssub.s32 4096, 4096
      %19 = vsyncadd [#allocation3], %s18
      %s20 = sshll.u32 [#allocation2], 4
      %s21 = int_to_ptr.vmem [resolvable:$true] %s20
      %26 = dma.hbm_to_vmem [thread:$0]  %s2, 4096, %s21, [#allocation3], 128, 128, 8
    $region13: #{frequency_loss.1} parent=1 // pred_fallthru
      _
    // Predicated region
    $region14: #{frequency_loss.1} parent=1 // pred_check
      _
    $region15: #{frequency_loss.1} parent=1 // pred_check_branch
      %28 = sbr.rel (0) target = $region17
    $region16: #{frequency_loss.1} parent=1 // pred_region
      _
    $region17: #{frequency_loss.1} parent=1 // pred_fallthru
      _
    // Predicated region
    $region18: #{frequency_loss.1} parent=1 // pred_check
      _
    $region19: #{frequency_loss.1} parent=1 // pred_check_branch
      %30 = sbr.rel (0) target = $region21
    $region20: #{frequency_loss.1} parent=1 // pred_region
      %31 = dma.done [#allocation3], 4096
    $region21: #{frequency_loss.1} parent=1 // pred_fallthru
      _
    %v32 = vld [vmem:[%s0] sm:$0xff]
    %v33 = vld [vmem:[%s0 + $0x8] sm:$0xff]
    %v34 = vld [vmem:[%s1] sm:$0xff]
    %v35 = vld [vmem:[%s1 + $0x8] sm:$0xff]
    %v36 = vld [vmem:[#allocation2] sm:$0xff]
    %v37 = vld [vmem:[#allocation2 + $0x8] sm:$0xff]
    %v38 = vld [vmem:[#allocation2 + $0x10] sm:$0xff]
    %v39 = vld [vmem:[#allocation2 + $0x18] sm:$0xff]
    %v40 = vld [vmem:[#allocation2 + $0x20] sm:$0xff]
    %v41 = vld [vmem:[#allocation2 + $0x28] sm:$0xff]
    %v42 = vld [vmem:[#allocation2 + $0x30] sm:$0xff]
    %v43 = vld [vmem:[#allocation2 + $0x38] sm:$0xff]
    %v44 = vld [vmem:[#allocation2 + $0x40] sm:$0xff]
    %v45 = vld [vmem:[#allocation2 + $0x48] sm:$0xff]
    %v46 = vld [vmem:[#allocation2 + $0x50] sm:$0xff]
    %v47 = vld [vmem:[#allocation2 + $0x58] sm:$0xff]
    %v48 = vld [vmem:[#allocation2 + $0x60] sm:$0xff]
    %v49 = vld [vmem:[#allocation2 + $0x68] sm:$0xff]
    %v50 = vld [vmem:[#allocation2 + $0x70] sm:$0xff]
    %v51 = vld [vmem:[#allocation2 + $0x78] sm:$0xff]
    %v52 = vld [vmem:[#allocation2 + $0x80] sm:$0xff]
    %v53 = vld [vmem:[#allocation2 + $0x88] sm:$0xff]
    %v54 = vld [vmem:[#allocation2 + $0x90] sm:$0xff]
    %v55 = vld [vmem:[#allocation2 + $0x98] sm:$0xff]
    %v56 = vld [vmem:[#allocation2 + $0xa0] sm:$0xff]
    %v57 = vld [vmem:[#allocation2 + $0xa8] sm:$0xff]
    %v58 = vld [vmem:[#allocation2 + $0xb0] sm:$0xff]
    %v59 = vld [vmem:[#allocation2 + $0xb8] sm:$0xff]
    %v60 = vld [vmem:[#allocation2 + $0xc0] sm:$0xff]
    %v61 = vld [vmem:[#allocation2 + $0xc8] sm:$0xff]
    %v62 = vld [vmem:[#allocation2 + $0xd0] sm:$0xff]
    %v63 = vld [vmem:[#allocation2 + $0xd8] sm:$0xff]
    %v64 = vld [vmem:[#allocation2 + $0xe0] sm:$0xff]
    %v65 = vld [vmem:[#allocation2 + $0xe8] sm:$0xff]
    %v66 = vld [vmem:[#allocation2 + $0xf0] sm:$0xff]
    %v67 = vld [vmem:[#allocation2 + $0xf8] sm:$0xff]
    %68 = vmatprep.subr.mxu0 0.0
    %69 = vmatpush1.msra.mxu0 %v51
    %70 = vmatprep.subr.mxu0 0.0
    %71 = vmatpush1.msra.mxu0 %v50
    %72 = vmatprep.subr.mxu0 0.0
    %73 = vmatpush1.msra.mxu0 %v49
    %74 = vmatprep.subr.mxu0 0.0
    %75 = vmatpush1.msra.mxu0 %v48
    %76 = vmatprep.subr.mxu0 0.0
    %77 = vmatpush1.msra.mxu0 %v47
    %78 = vmatprep.subr.mxu0 0.0
    %79 = vmatpush1.msra.mxu0 %v46
    %80 = vmatprep.subr.mxu0 0.0
    %81 = vmatpush1.msra.mxu0 %v45
    %82 = vmatprep.subr.mxu0 0.0
    %83 = vmatpush1.msra.mxu0 %v44
    %84 = vmatprep.subr.mxu0 0.0
    %85 = vmatpush1.msra.mxu0 %v43
    %86 = vmatprep.subr.mxu0 0.0
    %87 = vmatpush1.msra.mxu0 %v42
    %88 = vmatprep.subr.mxu0 0.0
    %89 = vmatpush1.msra.mxu0 %v41
    %90 = vmatprep.subr.mxu0 0.0
    %91 = vmatpush1.msra.mxu0 %v40
    %92 = vmatprep.subr.mxu0 0.0
    %93 = vmatpush1.msra.mxu0 %v39
    %94 = vmatprep.subr.mxu0 0.0
    %95 = vmatpush1.msra.mxu0 %v38
    %96 = vmatprep.subr.mxu0 0.0
    %97 = vmatpush1.msra.mxu0 %v37
    %98 = vmatprep.subr.mxu0 0.0
    %99 = vmatpush1.msra.mxu0 %v36
    %100 = vmatprep.subr.mxu0 0.0
    %101 = vmatpush2.msra.mxu0 %v67
    %102 = vmatprep.subr.mxu0 0.0
    %103 = vmatpush2.msra.mxu0 %v66
    %104 = vmatprep.subr.mxu0 0.0
    %105 = vmatpush2.msra.mxu0 %v65
    %106 = vmatprep.subr.mxu0 0.0
    %107 = vmatpush2.msra.mxu0 %v64
    %108 = vmatprep.subr.mxu0 0.0
    %109 = vmatpush2.msra.mxu0 %v63
    %110 = vmatprep.subr.mxu0 0.0
    %111 = vmatpush2.msra.mxu0 %v62
    %112 = vmatprep.subr.mxu0 0.0
    %113 = vmatpush2.msra.mxu0 %v61
    %114 = vmatprep.subr.mxu0 0.0
    %115 = vmatpush2.msra.mxu0 %v60
    %116 = vmatprep.subr.mxu0 0.0
    %117 = vmatpush2.msra.mxu0 %v59
    %118 = vmatprep.subr.mxu0 0.0
    %119 = vmatpush2.msra.mxu0 %v58
    %120 = vmatprep.subr.mxu0 0.0
    %121 = vmatpush2.msra.mxu0 %v57
    %122 = vmatprep.subr.mxu0 0.0
    %123 = vmatpush2.msra.mxu0 %v56
    %124 = vmatprep.subr.mxu0 0.0
    %125 = vmatpush2.msra.mxu0 %v55
    %126 = vmatprep.subr.mxu0 0.0
    %127 = vmatpush2.msra.mxu0 %v54
    %128 = vmatprep.subr.mxu0 0.0
    %129 = vmatpush2.msra.mxu0 %v53
    %130 = vmatprep.subr.mxu0 0.0
    %131 = vmatpush2.msra.mxu0 %v52
    %132 = vmatprep.mubr.f32.mxu0 %v33
    %133 = vmatmul.mubr.f32.gmra.mxu0 %v32
    %v134 = vpop.f32.mrf.mxu0
    %v135 = vadd.f32 0.0, %v134
    %v136 = vpop.f32.mrf.mxu0
    %137 = vmatprep.mubr.f32.mxu0 %v35
    %138 = vmatmul.mubr.f32.gmra.mxu0 %v34
    %v139 = vpop.f32.mrf.mxu0
    %v140 = vadd.f32 0.0, %v139
    %v141 = vpop.f32.mrf.mxu0
    %142 = vdwg.mxu0
    %v143 = vld [vmem:[%s3] sm:$0xff]
    %v144 = vld [vmem:[%s3 + $0x8] sm:$0xff]
    %v145 = vld [vmem:[%s3 + $0x10] sm:$0xff]
    %v146 = vld [vmem:[%s3 + $0x18] sm:$0xff]
    %v147 = vld [vmem:[%s3 + $0x20] sm:$0xff]
    %v148 = vld [vmem:[%s3 + $0x28] sm:$0xff]
    %v149 = vld [vmem:[%s3 + $0x30] sm:$0xff]
    %v150 = vld [vmem:[%s3 + $0x38] sm:$0xff]
    %v151 = vld [vmem:[%s3 + $0x40] sm:$0xff]
    %v152 = vld [vmem:[%s3 + $0x48] sm:$0xff]
    %v153 = vld [vmem:[%s3 + $0x50] sm:$0xff]
    %v154 = vld [vmem:[%s3 + $0x58] sm:$0xff]
    %v155 = vld [vmem:[%s3 + $0x60] sm:$0xff]
    %v156 = vld [vmem:[%s3 + $0x68] sm:$0xff]
    %v157 = vld [vmem:[%s3 + $0x70] sm:$0xff]
    %v158 = vld [vmem:[%s3 + $0x78] sm:$0xff]
    %v159 = vld [vmem:[%s3 + $0x80] sm:$0xff]
    %v160 = vld [vmem:[%s3 + $0x88] sm:$0xff]
    %v161 = vld [vmem:[%s3 + $0x90] sm:$0xff]
    %v162 = vld [vmem:[%s3 + $0x98] sm:$0xff]
    %v163 = vld [vmem:[%s3 + $0xa0] sm:$0xff]
    %v164 = vld [vmem:[%s3 + $0xa8] sm:$0xff]
    %v165 = vld [vmem:[%s3 + $0xb0] sm:$0xff]
    %v166 = vld [vmem:[%s3 + $0xb8] sm:$0xff]
    %v167 = vld [vmem:[%s3 + $0xc0] sm:$0xff]
    %v168 = vld [vmem:[%s3 + $0xc8] sm:$0xff]
    %v169 = vld [vmem:[%s3 + $0xd0] sm:$0xff]
    %v170 = vld [vmem:[%s3 + $0xd8] sm:$0xff]
    %v171 = vld [vmem:[%s3 + $0xe0] sm:$0xff]
    %v172 = vld [vmem:[%s3 + $0xe8] sm:$0xff]
    %v173 = vld [vmem:[%s3 + $0xf0] sm:$0xff]
    %v174 = vld [vmem:[%s3 + $0xf8] sm:$0xff]
    %175 = vmatprep.subr.mxu0 0.0
    %176 = vmatpush1.msra.mxu0 %v158
    %177 = vmatprep.subr.mxu0 0.0
    %178 = vmatpush1.msra.mxu0 %v157
    %179 = vmatprep.subr.mxu0 0.0
    %180 = vmatpush1.msra.mxu0 %v156
    %181 = vmatprep.subr.mxu0 0.0
    %182 = vmatpush1.msra.mxu0 %v155
    %183 = vmatprep.subr.mxu0 0.0
    %184 = vmatpush1.msra.mxu0 %v154
    %185 = vmatprep.subr.mxu0 0.0
    %186 = vmatpush1.msra.mxu0 %v153
    %187 = vmatprep.subr.mxu0 0.0
    %188 = vmatpush1.msra.mxu0 %v152
    %189 = vmatprep.subr.mxu0 0.0
    %190 = vmatpush1.msra.mxu0 %v151
    %191 = vmatprep.subr.mxu0 0.0
    %192 = vmatpush1.msra.mxu0 %v150
    %193 = vmatprep.subr.mxu0 0.0
    %194 = vmatpush1.msra.mxu0 %v149
    %195 = vmatprep.subr.mxu0 0.0
    %196 = vmatpush1.msra.mxu0 %v148
    %197 = vmatprep.subr.mxu0 0.0
    %198 = vmatpush1.msra.mxu0 %v147
    %199 = vmatprep.subr.mxu0 0.0
    %200 = vmatpush1.msra.mxu0 %v146
    %201 = vmatprep.subr.mxu0 0.0
    %202 = vmatpush1.msra.mxu0 %v145
    %203 = vmatprep.subr.mxu0 0.0
    %204 = vmatpush1.msra.mxu0 %v144
    %205 = vmatprep.subr.mxu0 0.0
    %206 = vmatpush1.msra.mxu0 %v143
    %207 = vmatprep.subr.mxu0 0.0
    %208 = vmatpush2.msra.mxu0 %v174
    %209 = vmatprep.subr.mxu0 0.0
    %210 = vmatpush2.msra.mxu0 %v173
    %211 = vmatprep.subr.mxu0 0.0
    %212 = vmatpush2.msra.mxu0 %v172
    %213 = vmatprep.subr.mxu0 0.0
    %214 = vmatpush2.msra.mxu0 %v171
    %215 = vmatprep.subr.mxu0 0.0
    %216 = vmatpush2.msra.mxu0 %v170
    %217 = vmatprep.subr.mxu0 0.0
    %218 = vmatpush2.msra.mxu0 %v169
    %219 = vmatprep.subr.mxu0 0.0
    %220 = vmatpush2.msra.mxu0 %v168
    %221 = vmatprep.subr.mxu0 0.0
    %222 = vmatpush2.msra.mxu0 %v167
    %223 = vmatprep.subr.mxu0 0.0
    %224 = vmatpush2.msra.mxu0 %v166
    %225 = vmatprep.subr.mxu0 0.0
    %226 = vmatpush2.msra.mxu0 %v165
    %227 = vmatprep.subr.mxu0 0.0
    %228 = vmatpush2.msra.mxu0 %v164
    %229 = vmatprep.subr.mxu0 0.0
    %230 = vmatpush2.msra.mxu0 %v163
    %231 = vmatprep.subr.mxu0 0.0
    %232 = vmatpush2.msra.mxu0 %v162
    %233 = vmatprep.subr.mxu0 0.0
    %234 = vmatpush2.msra.mxu0 %v161
    %235 = vmatprep.subr.mxu0 0.0
    %236 = vmatpush2.msra.mxu0 %v160
    %237 = vmatprep.subr.mxu0 0.0
    %238 = vmatpush2.msra.mxu0 %v159
    %239 = vmatprep.mubr.f32.mxu0 %v33
    %240 = vmatmul.mubr.f32.gmra.mxu0 %v32
    %v241 = vpop.f32.mrf.mxu0
    %v242 = vadd.f32 0.0, %v241
    %v243 = vpop.f32.mrf.mxu0
    %244 = vmatprep.mubr.f32.mxu0 %v35
    %245 = vmatmul.mubr.f32.gmra.mxu0 %v34
    %v246 = vpop.f32.mrf.mxu0
    %v247 = vadd.f32 0.0, %v246
    %v248 = vpop.f32.mrf.mxu0
    %249 = vdwg.mxu0
    %v250 = vmul.f32 %v135, %v135
    %v251 = vmul.f32 %v140, %v140
    %v252 = vmul.f32 %v242, %v242
    %v253 = vmul.f32 %v247, %v247
    %v254 = vadd.f32 %v250, %v252
    %v255 = vadd.f32 %v251, %v253
    %v256 = vrsqrt.pop %v254
    %v257 = vmul.f32 %v254, %v256
    %vm258 = vcmp.eq.f32.partialorder %v254, inf
    %v259 = vsel %vm258, %v254, %v257
    %vm260 = vcmp.eq.f32.partialorder %v254, 0.0
    %v261 = vand.u32 %v254, 2147483648
    %v262 = vsel %vm260, %v261, %v259
    %v263 = vrsqrt.pop %v255
    %v264 = vmul.f32 %v255, %v263
    %vm265 = vcmp.eq.f32.partialorder %v255, inf
    %v266 = vsel %vm265, %v255, %v264
    %vm267 = vcmp.eq.f32.partialorder %v255, 0.0
    %v268 = vand.u32 %v255, 2147483648
    %v269 = vsel %vm267, %v268, %v266
    %v270 = vsub.f32 %v262, %v269
    %v271 = vand.u32 2147483647, %v270
    %vm272 = vcmask 736256
    %v273 = vsel %vm272, %v271, 0.0
    %274 = vadd.xlane.f32.xlu0 %v273
    %v275 = vpop.xlane.xlu0 %274
    %v276 = vrot.slane %v275, 4
    %v277 = vadd.f32 %v275, %v276
    %v278 = vrot.slane %v277, 2
    %v279 = vadd.f32 %v277, %v278
    %v280 = vrot.slane %v279, 1
    %v281 = vadd.f32 %v279, %v280
    %s282 = vtos %v281
    %s283 = smul.f32 %s282, 0.0013888889
    %s284 = scalar_lea.smem [#allocation5], 0
    %285 = sst [smem:[%s284]] %s283
    // Predicated region
    $region22: #{frequency_loss.1} parent=1 // pred_check
      _
    $region23: #{frequency_loss.1} parent=1 // pred_check_branch
      %287 = sbr.rel (0) target = $region25
    $region24: #{frequency_loss.1} parent=1 // pred_region
      %s289 = ssub.s32 16, 16
      %290 = vsyncadd [#allocation4], %s289
      %293 = dma.smem_to_hbm [#allocation5], 16, %s4, [#allocation4]
    $region25: #{frequency_loss.1} parent=1 // pred_fallthru
      _
    // Predicated region
    $region26: #{frequency_loss.1} parent=1 // pred_check
      _
    $region27: #{frequency_loss.1} parent=1 // pred_check_branch
      %295 = sbr.rel (0) target = $region29
    $region28: #{frequency_loss.1} parent=1 // pred_region
      %296 = dma.done [#allocation4], 16
    $region29: #{frequency_loss.1} parent=1 // pred_fallthru
      _
    %297 = sfence
    %298 = vsyncpa [#allocation3], 1
    %299 = vsyncpa [#allocation4], 1

</llo_original>
